<compile_context>
chip_gen: v7x
topology: tpu7x:2x2x1
jax: 0.10.0
libtpu: 0.0.40
codegen_flags: <defaults>
</compile_context>

<pallas_src>
import functools
import math

import jax
import jax.numpy as jnp
from jax import lax
from jax.experimental import pallas as pl
from jax.experimental.pallas import tpu as pltpu

_POSINF_SAFE = 10000.0
_NEGINF_SAFE = -10000.0


def _sanitize(x):
    """nan -> 0, +inf -> 1e4, -inf -> -1e4 (identity on finite values)."""
    x = jnp.where(jnp.isnan(x), jnp.zeros_like(x), x)
    x = jnp.where(x == jnp.inf, jnp.full_like(x, _POSINF_SAFE), x)
    x = jnp.where(x == -jnp.inf, jnp.full_like(x, _NEGINF_SAFE), x)
    return x


# ---------------------------------------------------------------------------
# Kernels
# ---------------------------------------------------------------------------
def _layernorm_kernel(x_ref, gamma_ref, beta_ref, normed_ref, *, eps):
    # Single-pass stats (E[x^2] - mean^2): avoids a full-tile f32 `centered`
    # temporary (less VMEM scratch / vreg pressure).  Inputs are clamped to
    # +-1e4 by _sanitize, so catastrophic cancellation is not a concern here.
    x = _sanitize(x_ref[...].astype(jnp.float32))
    mean = jnp.mean(x, axis=-1, keepdims=True)
    mean_sq = jnp.mean(x * x, axis=-1, keepdims=True)
    var = jnp.maximum(mean_sq - mean * mean, 0.0)
    inv = lax.rsqrt(var + eps)                       # EUP slot; ~free vs VPU
    gamma = gamma_ref[...].astype(jnp.float32)
    beta = beta_ref[...].astype(jnp.float32)
    normed_ref[...] = ((x - mean) * inv * gamma + beta).astype(normed_ref.dtype)


def _residual_eval_kernel(x_ref, sub_ref, out_ref, *, compute_dtype):
    x = _sanitize(x_ref[...].astype(compute_dtype))
    sub = _sanitize(sub_ref[...].astype(compute_dtype))
    out_ref[...] = _sanitize(x + sub).astype(out_ref.dtype)


def _residual_dropout_kernel(seed_ref, x_ref, sub_ref, out_ref, *,
                             dropout_p, compute_dtype):
    # Per-tile PRNG stream: seed + grid step index.
    pltpu.prng_seed(seed_ref[0] + pl.program_id(0))
    x = _sanitize(x_ref[...].astype(compute_dtype))
    sub = _sanitize(sub_ref[...].astype(compute_dtype))
    if dropout_p >= 1.0:                             # degenerate: drop everything
        sub = jnp.zeros_like(sub)
    else:
        bits = pltpu.bitcast(pltpu.prng_random_bits(sub.shape), jnp.uint32)
        threshold = jnp.uint32(min(int(dropout_p * 4294967296.0), 4294967295))
        keep = bits >= threshold                     # P(keep) = 1 - dropout_p
        scale = jnp.asarray(1.0 / (1.0 - dropout_p), dtype=compute_dtype)
        sub = jnp.where(keep, sub * scale, jnp.zeros_like(sub))
    out_ref[...] = _sanitize(x + sub).astype(out_ref.dtype)


# ---------------------------------------------------------------------------
# Generation-aware sizing helpers
# ---------------------------------------------------------------------------
def _tpu_config():
    """(vmem_budget_bytes, vmem_limit_bytes_or_None, allow_native_bf16)."""
    kind = ""
    try:
        kind = jax.devices()[0].device_kind.lower()
    except Exception:
        pass
    if "v7" in kind:
        return 40 << 20, 56 << 20, True     # 64 MiB physical VMEM, 2 TCs
    if "v6" in kind:
        return 64 << 20, 96 << 20, True     # 128 MiB physical, bf16 VALU
    if "v5 lite" in kind or "v5lite" in kind or "v5e" in kind:
        return 64 << 20, 96 << 20, False    # 128 MiB physical, no bf16 VALU
    if "v5" in kind or "v4" in kind:
        return 64 << 20, 96 << 20, False
    # Unknown / older chips (v2/v3 have ~16 MiB VMEM): stay conservative and
    # do not override the scoped-VMEM limit.
    return 8 << 20, None, False


def _pick_tile_rows(rows, bytes_per_row, vmem_budget):
    """Biggest row tile fitting the VMEM budget, with >= 2 grid steps when possible."""
    if rows <= 8:
        return rows                                   # full extent; tiny shapes
    tr = (int(vmem_budget) // max(1, int(bytes_per_row))) // 8 * 8
    tr = max(8, tr)
    # Guarantee >= 2 grid steps so the "parallel" row axis can shard across
    # both TensorCores on v7x.
    half = ((rows + 1) // 2 + 7) // 8 * 8
    return max(8, min(tr, half))


def _lane_dense_layout(rows, d_model, max_cols=2048):
    """Lane-dense 2D layout for the purely-elementwise residual kernel."""
    if d_model % 128 == 0:
        return rows, d_model
    total = rows * d_model
    if total % 128 != 0:
        return rows, d_model                          # fall back to original layout
    start = (min(max_cols, total) // 128) * 128
    cols = 128
    for c in range(start, 0, -128):
        if total % c == 0:
            cols = c
            break
    return total // cols, cols


# ---------------------------------------------------------------------------
# Wrapper
# ---------------------------------------------------------------------------
def residual_connection(x, sublayer, gamma, beta, *, eps=1e-5, dropout_p=0.1,
                        training=False, rng_seed=0):
    """y = x + dropout(sublayer(LayerNorm(x))), with non-finite sanitization."""
    orig_shape = x.shape
    d_model = orig_shape[-1]
    rows = math.prod(orig_shape[:-1])
    elem_bytes = jnp.dtype(x.dtype).itemsize

    vmem_budget, vmem_limit, allow_bf16 = _tpu_config()
    cp_kwargs = dict(dimension_semantics=("parallel",))
    if vmem_limit is not None:
        cp_kwargs["vmem_limit_bytes"] = int(vmem_limit)
    compiler_params = pltpu.CompilerParams(**cp_kwargs)

    x2 = x.reshape(rows, d_model)
    gamma2 = gamma.reshape(1, d_model)
    beta2 = beta.reshape(1, d_model)

    # --- kernel A: sanitize + LayerNorm ------------------------------------
    # 2 row streams (x, normed) double-buffered + ~2 f32 temporaries.
    bpr_a = d_model * (4 * elem_bytes + 8)
    tr_a = _pick_tile_rows(rows, bpr_a, vmem_budget)
    grid_a = (pl.cdiv(rows, tr_a),)
    row_spec_a = pl.BlockSpec((tr_a, d_model), lambda i: (i, 0))
    vec_spec = pl.BlockSpec((1, d_model), lambda i: (0, 0))

    normed = pl.pallas_call(
        functools.partial(_layernorm_kernel, eps=float(eps)),
        out_shape=jax.ShapeDtypeStruct((rows, d_model), x.dtype),
        grid_spec=pltpu.PrefetchScalarGridSpec(
            num_scalar_prefetch=0,
            grid=grid_a,
            in_specs=[row_spec_a, vec_spec, vec_spec],
            out_specs=row_spec_a,
        ),
        compiler_params=compiler_params,
        cost_estimate=pl.CostEstimate(
            flops=10 * rows * d_model,
            transcendentals=rows,
            bytes_accessed=2 * rows * d_model * elem_bytes),
    )(x2, gamma2, beta2)

    # --- arbitrary sublayer runs as plain JAX between the two kernels -------
    sub_out = sublayer(normed.reshape(orig_shape)).reshape(rows, d_model)
    # TODO(synk): if the sublayer ends in a matmul we control, fold kernel B
    # into that matmul's epilogue to avoid one full HBM round-trip of sub_out.

    # --- kernel B: sanitize + [dropout] + residual add + sanitize -----------
    compute_dtype = (x.dtype if (allow_bf16 and x.dtype == jnp.bfloat16)
                     else jnp.float32)
    compute_bytes = jnp.dtype(compute_dtype).itemsize
    rows_b, cols_b = _lane_dense_layout(rows, d_model)
    x_b = x2.reshape(rows_b, cols_b)
    sub_b = sub_out.reshape(rows_b, cols_b)
    # 3 row streams (x, sub, out) double-buffered + ~2 compute temporaries.
    bpr_b = cols_b * (6 * elem_bytes + 2 * compute_bytes)
    tr_b = _pick_tile_rows(rows_b, bpr_b, vmem_budget)
    grid_b = (pl.cdiv(rows_b, tr_b),)
    out_shape_b = jax.ShapeDtypeStruct((rows_b, cols_b), x.dtype)
    ce_b = pl.CostEstimate(flops=9 * rows * d_model, transcendentals=0,
                           bytes_accessed=3 * rows * d_model * elem_bytes)
    alias_ok = sub_b.dtype == x.dtype and sub_b.shape == (rows_b, cols_b)

    if training and dropout_p > 0.0:
        seed = jnp.asarray([int(rng_seed)], dtype=jnp.int32)
        row_spec_bp = pl.BlockSpec((tr_b, cols_b), lambda i, seed_ref: (i, 0))
        out = pl.pallas_call(
            functools.partial(_residual_dropout_kernel,
                              dropout_p=float(dropout_p),
                              compute_dtype=compute_dtype),
            out_shape=out_shape_b,
            grid_spec=pltpu.PrefetchScalarGridSpec(
                num_scalar_prefetch=1,
                grid=grid_b,
                in_specs=[row_spec_bp, row_spec_bp],
                out_specs=row_spec_bp,
            ),
            compiler_params=compiler_params,
            cost_estimate=ce_b,
            # Operand indices count the scalar-prefetch arg: (seed, x, sub).
            input_output_aliases=({2: 0} if alias_ok else {}),
        )(seed, x_b, sub_b)
    else:
        row_spec_b = pl.BlockSpec((tr_b, cols_b), lambda i: (i, 0))
        out = pl.pallas_call(
            functools.partial(_residual_eval_kernel,
                              compute_dtype=compute_dtype),
            out_shape=out_shape_b,
            grid_spec=pltpu.PrefetchScalarGridSpec(
                num_scalar_prefetch=0,
                grid=grid_b,
                in_specs=[row_spec_b, row_spec_b],
                out_specs=row_spec_b,
            ),
            compiler_params=compiler_params,
            cost_estimate=ce_b,
            input_output_aliases=({1: 0} if alias_ok else {}),
        )(x_b, sub_b)

    return out.reshape(orig_shape)


# ---------------------------------------------------------------------------
# Pure-JAX reference (eval mode: dropout = identity)
# ---------------------------------------------------------------------------
def _reference(x, sublayer, gamma, beta, eps):
    x = _sanitize(x.astype(jnp.float32))
    mean = jnp.mean(x, axis=-1, keepdims=True)
    var = jnp.mean((x - mean) ** 2, axis=-1, keepdims=True)
    normed = (x - mean) * lax.rsqrt(var + eps) * gamma + beta
    sub = _sanitize(sublayer(normed))
    return _sanitize(x + sub)


if __name__ == "__main__":
    batch, seq, d_model = 2, 8, 32
    key = jax.random.PRNGKey(0)
    kx, kg, kb, kw = jax.random.split(key, 4)

    x = jax.random.normal(kx, (batch, seq, d_model), dtype=jnp.float32)
    # Exercise the nan_to_num safety path of the module.
    x = x.at[0, 0, 0].set(jnp.nan)
    x = x.at[1, 3, 5].set(jnp.inf)
    x = x.at[0, 7, 9].set(-jnp.inf)

    gamma = 1.0 + 0.1 * jax.random.normal(kg, (d_model,), dtype=jnp.float32)
    beta = 0.1 * jax.random.normal(kb, (d_model,), dtype=jnp.float32)
    w = jax.random.normal(kw, (d_model, d_model), dtype=jnp.float32) / jnp.sqrt(
        jnp.float32(d_model))

    def sublayer(h):
        return jnp.tanh(h @ w)

    out = residual_connection(x, sublayer, gamma, beta, eps=1e-5,
                              dropout_p=0.1, training=False)
    out = jax.block_until_ready(out)

    ref = _reference(x, sublayer, gamma, beta, 1e-5)
    assert out.shape == x.shape
    assert bool(jnp.all(jnp.isfinite(out)))
    assert jnp.allclose(out, ref, rtol=1e-5, atol=1e-4), float(
        jnp.max(jnp.abs(out - ref)))

    print("KERNEL_OK")
</pallas_src>

<mosaic_0001>
module attributes {stable_mosaic.version = 11 : i64} {
  func.func @_layernorm_kernel(%arg0: i32, %arg1: memref<8x32xf32, #tpu.memory_space<vmem>>, %arg2: memref<1x32xf32, #tpu.memory_space<vmem>>, %arg3: memref<1x32xf32, #tpu.memory_space<vmem>>, %arg4: memref<8x32xf32, #tpu.memory_space<vmem>>) attributes {dimension_semantics = [#tpu.dimension_semantics<parallel>], iteration_bounds = array<i64: 2>, scalar_prefetch = 0 : i64, scratch_operands = 0 : i64, tpu.core_type = #tpu.core_type<tc>, window_params = [{transform_indices = @transform_0, window_bounds = array<i64: 8, 32>}, {pipeline_mode = #tpu.pipeline_mode<synchronous>, transform_indices = @transform_1, window_bounds = array<i64: 1, 32>}, {pipeline_mode = #tpu.pipeline_mode<synchronous>, transform_indices = @transform_2, window_bounds = array<i64: 1, 32>}, {transform_indices = @transform_3, window_bounds = array<i64: 8, 32>}]} {
    %c0 = arith.constant 0 : index
    %c0_0 = arith.constant 0 : index
    %0 = vector.load %arg1[%c0, %c0_0] : memref<8x32xf32, #tpu.memory_space<vmem>>, vector<8x32xf32>
    %1 = arith.cmpf one, %0, %0 : vector<8x32xf32>
    %cst = arith.constant 0.000000e+00 : f32
    %2 = vector.broadcast %cst : f32 to vector<8x32xf32>
    %3 = arith.select %1, %2, %0 : vector<8x32xi1>, vector<8x32xf32>
    %cst_1 = arith.constant 0x7F800000 : f32
    %4 = vector.broadcast %cst_1 : f32 to vector<8x32xf32>
    %5 = arith.cmpf oeq, %3, %4 : vector<8x32xf32>
    %cst_2 = arith.constant 1.000000e+04 : f32
    %6 = vector.broadcast %cst_2 : f32 to vector<8x32xf32>
    %7 = arith.select %5, %6, %3 : vector<8x32xi1>, vector<8x32xf32>
    %cst_3 = arith.constant 0xFF800000 : f32
    %8 = vector.broadcast %cst_3 : f32 to vector<8x32xf32>
    %9 = arith.cmpf oeq, %7, %8 : vector<8x32xf32>
    %cst_4 = arith.constant -1.000000e+04 : f32
    %10 = vector.broadcast %cst_4 : f32 to vector<8x32xf32>
    %11 = arith.select %9, %10, %7 : vector<8x32xi1>, vector<8x32xf32>
    %cst_5 = arith.constant dense<0.000000e+00> : vector<8xf32>
    %12 = vector.multi_reduction <add>, %11, %cst_5 [1] : vector<8x32xf32> to vector<8xf32>
    %13 = vector.shape_cast %12 : vector<8xf32> to vector<8x1xf32>
    %cst_6 = arith.constant 3.200000e+01 : f32
    %14 = vector.broadcast %cst_6 : f32 to vector<8x1xf32>
    %15 = arith.divf %13, %14 : vector<8x1xf32>
    %16 = arith.mulf %11, %11 : vector<8x32xf32>
    %cst_7 = arith.constant dense<0.000000e+00> : vector<8xf32>
    %17 = vector.multi_reduction <add>, %16, %cst_7 [1] : vector<8x32xf32> to vector<8xf32>
    %18 = vector.shape_cast %17 : vector<8xf32> to vector<8x1xf32>
    %cst_8 = arith.constant 3.200000e+01 : f32
    %19 = vector.broadcast %cst_8 : f32 to vector<8x1xf32>
    %20 = arith.divf %18, %19 : vector<8x1xf32>
    %21 = arith.mulf %15, %15 : vector<8x1xf32>
    %22 = arith.subf %20, %21 : vector<8x1xf32>
    %cst_9 = arith.constant 0.000000e+00 : f32
    %23 = vector.broadcast %cst_9 : f32 to vector<8x1xf32>
    %24 = arith.maximumf %22, %23 : vector<8x1xf32>
    %cst_10 = arith.constant 9.99999974E-6 : f32
    %25 = vector.broadcast %cst_10 : f32 to vector<8x1xf32>
    %26 = arith.addf %24, %25 : vector<8x1xf32>
    %27 = math.rsqrt %26 : vector<8x1xf32>
    %c0_11 = arith.constant 0 : index
    %c0_12 = arith.constant 0 : index
    %28 = vector.load %arg2[%c0_11, %c0_12] : memref<1x32xf32, #tpu.memory_space<vmem>>, vector<1x32xf32>
    %c0_13 = arith.constant 0 : index
    %c0_14 = arith.constant 0 : index
    %29 = vector.load %arg3[%c0_13, %c0_14] : memref<1x32xf32, #tpu.memory_space<vmem>>, vector<1x32xf32>
    %30 = vector.broadcast %15 : vector<8x1xf32> to vector<8x32xf32>
    %31 = arith.subf %11, %30 : vector<8x32xf32>
    %32 = vector.broadcast %27 : vector<8x1xf32> to vector<8x32xf32>
    %33 = arith.mulf %31, %32 : vector<8x32xf32>
    %34 = vector.broadcast %28 : vector<1x32xf32> to vector<8x32xf32>
    %35 = arith.mulf %33, %34 : vector<8x32xf32>
    %36 = vector.broadcast %29 : vector<1x32xf32> to vector<8x32xf32>
    %37 = arith.addf %35, %36 : vector<8x32xf32>
    %c0_15 = arith.constant 0 : index
    %c0_16 = arith.constant 0 : index
    %38 = vector.load %arg4[%c0_15, %c0_16] : memref<8x32xf32, #tpu.memory_space<vmem>>, vector<8x32xf32>
    tpu.vector_store %arg4[%c0_15, %c0_16], %37 {strides = array<i32>} : memref<8x32xf32, #tpu.memory_space<vmem>>, vector<8x32xf32>,
    return
  }
  func.func @transform_0(%arg0: i32) -> (i32, i32) {
    %c0_i32 = arith.constant 0 : i32
    %c0_i32_0 = arith.constant 0 : i32
    return %arg0, %c0_i32 : i32, i32
  }
  func.func @transform_1(%arg0: i32) -> (i32, i32) {
    %c0_i32 = arith.constant 0 : i32
    %c0_i32_0 = arith.constant 0 : i32
    %c0_i32_1 = arith.constant 0 : i32
    return %c0_i32, %c0_i32_0 : i32, i32
  }
  func.func @transform_2(%arg0: i32) -> (i32, i32) {
    %c0_i32 = arith.constant 0 : i32
    %c0_i32_0 = arith.constant 0 : i32
    %c0_i32_1 = arith.constant 0 : i32
    return %c0_i32, %c0_i32_0 : i32, i32
  }
  func.func @transform_3(%arg0: i32) -> (i32, i32) {
    %c0_i32 = arith.constant 0 : i32
    %c0_i32_0 = arith.constant 0 : i32
    return %arg0, %c0_i32 : i32, i32
  }
}

</mosaic_0001>

<llo_original>
// kernel: tpu_custom_call.1
$region0: #{tpu_custom_call.1}
  #allocation0 [shape = 'u32[]', space=smem, size = 0x4, offset = 0x4, fixed_abs, tag = 'smem constant byte address 0x4 - core index']
  #allocation1 [shape = 'u32[144,128]{1,0:T(1,128)}', space=vmem, size = 0x12000, scoped, tag = 'internal scratch']
  %s0 = inlined_call_operand.hbm [shape: f32[16,32], index: 0, kind: input, shape index: {}]
  %s1 = inlined_call_operand.vmem [shape: f32[1,32], index: 1, kind: input, shape index: {}]
  %s2 = inlined_call_operand.vmem [shape: f32[1,32], index: 2, kind: input, shape index: {}]
  %s3 = inlined_call_operand.hbm [shape: f32[16,32], index: 3, kind: output, shape index: {}]
  %s4 = sld [smem:[#allocation0]]
  $region49: #{tpu_custom_call.1} parent=0
    _
  %s6 = ssub.s32 1, %s4
  %s7 = scalar_select 0, %s6, %s4
  $region1: #{tpu_custom_call.1} parent=0
    #allocation2 [shape = 'u8[8192]{0}', space=vmem, size = 0x2000, scoped, tag = 'input window, operand 0']
    #allocation3 [shape = 's32[2]{0}', space=sflag, size = 0x8, scoped, tag = 'scoped memory for tpu_custom_call.1']
    #allocation4 [shape = 's32[2]{0}', space=sflag, size = 0x8, scoped, tag = 'scoped memory for tpu_custom_call.1']
    #allocation5 [shape = 'u8[8192]{0}', space=vmem, size = 0x2000, scoped, tag = 'output window, operand 0']
    %8 = vsyncpa [#allocation3], 0
    %s9 = scalar_lea.sflag [#allocation3], 1
    %10 = vsyncpa %s9, 0
    %11 = vsyncpa [#allocation4], 0
    %s12 = scalar_lea.sflag [#allocation4], 1
    %13 = vsyncpa %s12, 0
    loop: start=0, step=1, limit=4
    $region2: #{tpu_custom_call.1} parent=1 // loop_pre_header
      _
    $region3: #{tpu_custom_call.1} parent=1 // loop_header
      %s15 = sphi 0, %s19
      %p16 = scmp.ge.s32.totalorder %s15, 4
      %s25 = sphi 0, %s27
      %s28 = sphi 0, %s25
      %s29 = sphi 0, %s28
      %s45 = sphi 0, %s29
      %s49 = sphi 0, %s49
      %s51 = sphi 0, %s49
      %s52 = sphi 0, %s51
      %s66 = sphi 0, %s52
      %s70 = sphi 0, %s70
      %s72 = sphi 0, %s70
      %s73 = sphi 0, %s72
      %s87 = sphi 0, %s73
      %s93 = sphi 0, %s95
      %s96 = sphi 0, %s93
      %s97 = sphi 0, %s96
      %s113 = sphi 0, %s97
    $region4: #{tpu_custom_call.1} parent=1 // loop_header_branch
      %18 = sbr.rel (%p16) target = $region8
    $region5: #{tpu_custom_call.1} parent=1 // loop_body
      %s20 = ssub.s32 %s15, 1
      %s21 = ssub.s32 %s15, 2
      %s22 = sadd.s32 %s15, 1
      %s23 = ssub.s32 %s15, %s22
      %p24 = scmp.eq.s32.totalorder %s23, 0
      %s26 = sadd.s32 %s25, 1
      %s27 = scalar_select %p24, %s25, %s26
      %p30 = pneg %p24
      %p31 = scmp.eq.s32.totalorder %s15, 1
      %p32 = por %p30, %p31
      %p33 = scmp.ne.s32.totalorder %s25, %s28
      %p34 = scmp.eq.s32.totalorder %s15, 0
      %p35 = por %p33, %p34
      %p36 = scmp.ne.s32.totalorder %s25, %s28
      %p37 = scmp.eq.s32.totalorder %s20, 1
      %p38 = por %p36, %p37
      %p39 = scmp.ne.s32.totalorder %s28, %s29
      %p40 = scmp.eq.s32.totalorder %s20, 0
      %p41 = por %p39, %p40
      %p42 = scmp.ne.s32.totalorder %s28, %s29
      %p43 = scmp.eq.s32.totalorder %s21, 1
      %p44 = por %p42, %p43
      %p46 = scmp.ne.s32.totalorder %s29, %s45
      %p47 = scmp.eq.s32.totalorder %s21, 0
      %p48 = por %p46, %p47
      %s50 = sadd.s32 %s49, 1
      %p53 = scmp.eq.s32.totalorder %s15, 1
      %p54 = scmp.ne.s32.totalorder %s49, %s51
      %p55 = scmp.eq.s32.totalorder %s15, 0
      %p56 = por %p54, %p55
      %p57 = scmp.ne.s32.totalorder %s49, %s51
      %p58 = scmp.eq.s32.totalorder %s20, 1
      %p59 = por %p57, %p58
      %p60 = scmp.ne.s32.totalorder %s51, %s52
      %p61 = scmp.eq.s32.totalorder %s20, 0
      %p62 = por %p60, %p61
      %p63 = scmp.ne.s32.totalorder %s51, %s52
      %p64 = scmp.eq.s32.totalorder %s21, 1
      %p65 = por %p63, %p64
      %p67 = scmp.ne.s32.totalorder %s52, %s66
      %p68 = scmp.eq.s32.totalorder %s21, 0
      %p69 = por %p67, %p68
      %s71 = sadd.s32 %s70, 1
      %p74 = scmp.eq.s32.totalorder %s15, 1
      %p75 = scmp.ne.s32.totalorder %s70, %s72
      %p76 = scmp.eq.s32.totalorder %s15, 0
      %p77 = por %p75, %p76
      %p78 = scmp.ne.s32.totalorder %s70, %s72
      %p79 = scmp.eq.s32.totalorder %s20, 1
      %p80 = por %p78, %p79
      %p81 = scmp.ne.s32.totalorder %s72, %s73
      %p82 = scmp.eq.s32.totalorder %s20, 0
      %p83 = por %p81, %p82
      %p84 = scmp.ne.s32.totalorder %s72, %s73
      %p85 = scmp.eq.s32.totalorder %s21, 1
      %p86 = por %p84, %p85
      %p88 = scmp.ne.s32.totalorder %s73, %s87
      %p89 = scmp.eq.s32.totalorder %s21, 0
      %p90 = por %p88, %p89
      %s91 = ssub.s32 %s15, %s22
      %p92 = scmp.eq.s32.totalorder %s91, 0
      %s94 = sadd.s32 %s93, 1
      %s95 = scalar_select %p92, %s93, %s94
      %p98 = pneg %p92
      %p99 = scmp.eq.s32.totalorder %s15, 1
      %p100 = por %p98, %p99
      %p101 = scmp.ne.s32.totalorder %s93, %s96
      %p102 = scmp.eq.s32.totalorder %s15, 0
      %p103 = por %p101, %p102
      %p104 = scmp.ne.s32.totalorder %s93, %s96
      %p105 = scmp.eq.s32.totalorder %s20, 1
      %p106 = por %p104, %p105
      %p107 = scmp.ne.s32.totalorder %s96, %s97
      %p108 = scmp.eq.s32.totalorder %s20, 0
      %p109 = por %p107, %p108
      %p110 = scmp.ne.s32.totalorder %s96, %s97
      %p111 = scmp.eq.s32.totalorder %s21, 1
      %p112 = por %p110, %p111
      %p114 = scmp.ne.s32.totalorder %s97, %s113
      %p115 = scmp.eq.s32.totalorder %s21, 0
      %p116 = por %p114, %p115
      %p117 = scmp.le.s32.totalorder 1, %s15
      %p118 = scmp.lt.s32.totalorder %s15, 3
      %p119 = pnand %p117, %p118
      %p120 = pneg %p119
      // Predicated region
      $region9: #{tpu_custom_call.1} parent=5 // pred_check
        _
      $region10: #{tpu_custom_call.1} parent=5 // pred_check_branch
        %122 = sbr.rel (%p119) target = $region12
      $region11: #{tpu_custom_call.1} parent=5 // pred_region
        %s123 = ssub.s32 %s15, 1
        // Predicated region
        $region13: #{tpu_custom_call.1} parent=11 // pred_check
          %p124 = pneg %p62
        $region14: #{tpu_custom_call.1} parent=11 // pred_check_branch
          %126 = sbr.rel (%p124) target = $region16
        $region15: #{tpu_custom_call.1} parent=11 // pred_region
          _
        $region16: #{tpu_custom_call.1} parent=11 // pred_fallthru
          _
        // Predicated region
        $region17: #{tpu_custom_call.1} parent=11 // pred_check
          %p127 = pneg %p83
        $region18: #{tpu_custom_call.1} parent=11 // pred_check_branch
          %129 = sbr.rel (%p127) target = $region20
        $region19: #{tpu_custom_call.1} parent=11 // pred_region
          _
        $region20: #{tpu_custom_call.1} parent=11 // pred_fallthru
          _
      $region12: #{tpu_custom_call.1} parent=5 // pred_fallthru
        _
      %p130 = scmp.lt.s32.totalorder %s15, 2
      // Predicated region
      $region21: #{tpu_custom_call.1} parent=5 // pred_check
        %p131 = pneg %p130
      $region22: #{tpu_custom_call.1} parent=5 // pred_check_branch
        %133 = sbr.rel (%p131) target = $region24
      $region23: #{tpu_custom_call.1} parent=5 // pred_region
        // Predicated region
        $region25: #{tpu_custom_call.1} parent=23 // pred_check
          %p134 = pneg %p35
        $region26: #{tpu_custom_call.1} parent=23 // pred_check_branch
          %136 = sbr.rel (%p134) target = $region28
        $region27: #{tpu_custom_call.1} parent=23 // pred_region
          %s137 = sand.u32 %s25, 1
          %s138 = scalar_lea.sflag [#allocation3], %s137
          %s139 = sand.u32 %s25, 1
          %s140 = smul.addr %s139, 8
          %s141 = scalar_lea.vmem [#allocation2], %s140
          %s143 = ssub.s32 128, 128
          %144 = vsyncadd %s138, %s143
          %s145 = smul.addr %s15, 128
          %s146 = scalar_lea.hbm %s0, %s145
          %s148 = sshll.u32 %s141, 4
          %s149 = int_to_ptr.vmem [resolvable:$true] %s148
          %151 = dma.hbm_to_vmem [thread:$0]  %s146, 128, %s149, %s138
        $region28: #{tpu_custom_call.1} parent=23 // pred_fallthru
          _
      $region24: #{tpu_custom_call.1} parent=5 // pred_fallthru
        _
      %p152 = scmp.le.s32.totalorder 1, %s15
      %p153 = scmp.lt.s32.totalorder %s15, 3
      %p154 = pnand %p152, %p153
      %p155 = pneg %p154
      // Predicated region
      $region29: #{tpu_custom_call.1} parent=5 // pred_check
        _
      $region30: #{tpu_custom_call.1} parent=5 // pred_check_branch
        %157 = sbr.rel (%p154) target = $region32
      $region31: #{tpu_custom_call.1} parent=5 // pred_region
        %s158 = ssub.s32 %s15, 1
        %s159 = sand.u32 %s28, 1
        %s160 = scalar_lea.sflag [#allocation3], %s159
        %s161 = sand.u32 %s28, 1
        %s162 = smul.addr %s161, 8
        %s163 = scalar_lea.vmem [#allocation2], %s162
        // Predicated region
        $region33: #{tpu_custom_call.1} parent=31 // pred_check
          %p164 = pneg %p41
        $region34: #{tpu_custom_call.1} parent=31 // pred_check_branch
          %166 = sbr.rel (%p164) target = $region36
        $region35: #{tpu_custom_call.1} parent=31 // pred_region
          %167 = dma.done %s160, 128
        $region36: #{tpu_custom_call.1} parent=31 // pred_fallthru
          _
        %s168 = sand.u32 %s28, 1
        %s169 = scalar_lea.sflag [#allocation3], %s168
        %s170 = sand.u32 %s28, 1
        %s171 = smul.addr %s170, 8
        %s172 = scalar_lea.vmem [#allocation2], %s171
        %p173 = pneg %p41
        %p174 = pneg %p38
        %p175 = pneg %p62
        %p176 = pneg %p59
        %p177 = pneg %p83
        %p178 = pneg %p80
        %p179 = pneg %p109
        %p180 = pneg %p106
        %s181 = sand.u32 %s96, 1
        %s182 = scalar_lea.sflag [#allocation4], %s181
        %s183 = sand.u32 %s96, 1
        %s184 = smul.addr %s183, 8
        %s185 = scalar_lea.vmem [#allocation5], %s184
        %v186 = vld [vmem:[%s163] sm:$0xff]
        %vm187 = vcmp.ne.f32.partialorder %v186, %v186
        %v188 = vsel %vm187, 0.0, %v186
        %vm189 = vcmp.eq.f32.partialorder %v188, inf
        %v190 = vsel %vm189, 10000.0, %v188
        %vm191 = vcmp.eq.f32.partialorder %v190, -inf
        %v192 = vsel %vm191, -10000.0, %v190
        %vm193 = vcmask 261120
        %v194 = vsel %vm193, %v192, 0.0
        %195 = vadd.xlane.f32.xlu0 %v194
        %v196 = vpop.xlane.xlu0 %195
        %v197 = vrcp.pop 32.0
        %v198 = vmul.f32 %v196, %v197
        %v199 = vmul.f32 %v192, %v192
        %v200 = vsel %vm193, %v199, 0.0
        %201 = vadd.xlane.f32.xlu0 %v200
        %v202 = vpop.xlane.xlu0 %201
        %v203 = vmul.f32 %v202, %v197
        %v204 = vmul.f32 %v198, %v198
        %v205 = vsub.f32 %v203, %v204
        %v206 = vmax.f32 %v205, 0.0
        %v207 = vadd.f32 %v206, 1e-05
        %v208 = vrsqrt.pop %v207
        %v209 = vld [vmem:[%s1] sm:$0x1]
        %v210 = vld [vmem:[%s2] sm:$0x1]
        %v211 = vsub.f32 %v192, %v198
        %v212 = vmul.f32 %v211, %v208
        %v214 = vlaneseq
        %v215 = vshrl.u32 %v214, 7
        %v216 = vsub.s32 0, %v215
        %v217 = vrot.slane %v209, %v216
        %v219 = vmul.f32 %v212, %v217
        %v221 = vlaneseq
        %v222 = vshrl.u32 %v221, 7
        %v223 = vsub.s32 0, %v222
        %v224 = vrot.slane %v210, %v223
        %v226 = vadd.f32 %v219, %v224
        %227 = vst.msk [vmem:[%s185] sm:$0xff] %vm193, %v226
        %s228 = sand.u32 %s96, 1
        %s229 = scalar_lea.sflag [#allocation4], %s228
        %s230 = sand.u32 %s96, 1
        %s231 = smul.addr %s230, 8
        %s232 = scalar_lea.vmem [#allocation5], %s231
        // Predicated region
        $region37: #{tpu_custom_call.1} parent=31 // pred_check
          %p233 = pneg %p106
        $region38: #{tpu_custom_call.1} parent=31 // pred_check_branch
          %235 = sbr.rel (%p233) target = $region40
        $region39: #{tpu_custom_call.1} parent=31 // pred_region
          %s237 = ssub.s32 128, 128
          %238 = vsyncadd %s229, %s237
          %s239 = smul.addr %s20, 128
          %s240 = scalar_lea.hbm %s3, %s239
          %s242 = sshll.u32 %s232, 4
          %s243 = int_to_ptr.vmem [resolvable:$true] %s242
          %245 = dma.vmem_to_hbm [thread:$0]  %s243, 128, %s240, %s229
        $region40: #{tpu_custom_call.1} parent=31 // pred_fallthru
          _
      $region32: #{tpu_custom_call.1} parent=5 // pred_fallthru
        _
      %p246 = scmp.le.s32.totalorder 2, %s15
      // Predicated region
      $region41: #{tpu_custom_call.1} parent=5 // pred_check
        %p247 = pneg %p246
      $region42: #{tpu_custom_call.1} parent=5 // pred_check_branch
        %249 = sbr.rel (%p247) target = $region44
      $region43: #{tpu_custom_call.1} parent=5 // pred_region
        %s250 = ssub.s32 %s15, 2
        // Predicated region
        $region45: #{tpu_custom_call.1} parent=43 // pred_check
          %p251 = pneg %p112
        $region46: #{tpu_custom_call.1} parent=43 // pred_check_branch
          %253 = sbr.rel (%p251) target = $region48
        $region47: #{tpu_custom_call.1} parent=43 // pred_region
          %s254 = sand.u32 %s97, 1
          %s255 = scalar_lea.sflag [#allocation4], %s254
          %s256 = sand.u32 %s97, 1
          %s257 = smul.addr %s256, 8
          %s258 = scalar_lea.vmem [#allocation5], %s257
          %259 = dma.done %s255, 128
        $region48: #{tpu_custom_call.1} parent=43 // pred_fallthru
          _
      $region44: #{tpu_custom_call.1} parent=5 // pred_fallthru
        _
    $region6: #{tpu_custom_call.1} parent=1 // loop_footer
      %s19 = sadd.s32 1, %s15
    $region7: #{tpu_custom_call.1} parent=1 // loop_footer_branch
      %14 = sbr.rel target = $region3
    $region8: #{tpu_custom_call.1} parent=1 // loop_exit
      _
    %260 = vsyncpa [#allocation3], 1
    %s261 = scalar_lea.sflag [#allocation3], 1
    %262 = vsyncpa %s261, 1
    %263 = vsyncpa [#allocation4], 1
    %s264 = scalar_lea.sflag [#allocation4], 1
    %265 = vsyncpa %s264, 1

</llo_original>
